<compile_context>
chip_gen: v6e
topology: v6e:2x2x1
jax: 0.10.0
libtpu: 0.0.40
codegen_flags: <defaults>
</compile_context>

<pallas_src>
import jax
import jax.numpy as jnp
from jax import lax
from jax.experimental import pallas as pl
from jax.experimental.pallas import tpu as pltpu

BN_EPS = 1e-5


def _dsconv_kernel(ph_ref, wdw_ref, b1_ref, wp_ref, b2_ref, o_ref):
    # ph_ref:  (1, 9, Cin, TS)   stride-2 tap planes (flattened Hout*Wout), tap = kh*3+kw
    # wdw_ref: (9, Cin, 1)       depthwise weights (BN1 scale folded)
    # b1_ref:  (Cin, 1)          folded BN1 bias
    # wp_ref:  (Cin, Cout, 1)    [tiny-Cin VPU path]  or  (Cout, Cin) [MXU path]
    # b2_ref:  (Cout, 1)         folded BN2 bias
    # o_ref:   (1, Cout, TS)     lane-dense output slab (flattened Hout*Wout)
    w = wdw_ref[...]                                   # (9, Cin, 1)

    # Depthwise: vectorized 9-tap FMA chain over the whole (Cin, TS) tile.
    acc = ph_ref[0, 0] * w[0]
    for k in range(1, 9):
        acc = acc + ph_ref[0, k] * w[k]
    y = jnp.clip(acc + b1_ref[...], 0.0, 6.0)          # BN1 (folded) + relu6, (Cin, TS)

    wp = wp_ref[...]
    if wp.ndim == 3:
        # Tiny contraction (Cin <= 8): MXU would run at a few % utilization -> VPU
        # outer-product accumulation over Cin.
        z = wp[0] * y[0:1, :]                          # (Cout,1)*(1,TS) -> (Cout, TS)
        for c in range(1, wp.shape[0]):
            z = z + wp[c] * y[c:c + 1, :]
    else:
        # Pointwise 1x1 conv == channel matmul on the MXU with large N (= TS lanes).
        z = jnp.dot(wp, y, preferred_element_type=jnp.float32)   # (Cout, TS)

    z = jnp.clip(z + b2_ref[...], 0.0, 6.0)            # BN2 (folded) + relu6
    o_ref[0] = z.astype(o_ref.dtype)


def _vmem_budgets():
    """Per-generation VMEM sizing (v7x has 64 MiB/TC; v5e/v6e 128 MiB)."""
    try:
        cap = int(getattr(pltpu.get_tpu_info(), "vmem_capacity_bytes", 64 << 20))
    except Exception:
        cap = 64 << 20
    ws_budget = max(8 << 20, cap // 8)                 # double-buffered working-set target
    vmem_limit = min(3 * cap // 4, 48 << 20)           # v7x-safe scoped limit
    return ws_budget, vmem_limit


def _pick_spatial_tile(s, cin, cout, n, ws_budget):
    """Flattened-spatial tile TS: lane-dense multiple of 128 sized against the VMEM
    budget; guarantees >=2 spatial tiles when the batch axis is degenerate (v7x megacore)."""
    if s <= 128:
        return s, s                                    # block == full dim, no padding
    bytes_per_pos = (9 * cin + cout) * 4 * 2           # tap planes + output, double-buffered f32
    ts = max(128, (ws_budget // bytes_per_pos) // 128 * 128)
    s_ceil = pl.cdiv(s, 128) * 128
    ts = min(ts, s_ceil)
    if n < 2:
        while ts > 128 and pl.cdiv(s_ceil, ts) < 2:
            ts -= 128
    s_pad = pl.cdiv(s, ts) * ts
    return ts, s_pad


@jax.jit
def ds_convolution(x_nchw, params):
    (w_dw, w_pw, g1, b1, m1, v1, g2, b2, m2, v2) = params
    n, cin, h, w = x_nchw.shape
    cout = w_pw.shape[0]
    hout = (h + 2 * 1 - 3) // 2 + 1
    wout = (w + 2 * 1 - 3) // 2 + 1
    s = hout * wout

    # ---- glue: zero-pad and extract the 9 offset-0 stride-2 tap planes (channels-first
    # preserved, spatial flattened so every kernel block is lane-dense).
    ph_h = 2 * hout + 1
    ph_w = 2 * wout + 1
    xp = jnp.pad(x_nchw.astype(jnp.float32),
                 ((0, 0), (0, 0), (1, ph_h - h - 1), (1, ph_w - w - 1)))
    planes = [
        xp[:, :, kh:kh + 2 * hout:2, kw:kw + 2 * wout:2].reshape(n, cin, s)
        for kh in range(3) for kw in range(3)
    ]
    ph = jnp.stack(planes, axis=1)                     # (N, 9, Cin, S)

    ws_budget, vmem_limit = _vmem_budgets()
    ts, s_pad = _pick_spatial_tile(s, cin, cout, n, ws_budget)
    if s_pad != s:
        ph = jnp.pad(ph, ((0, 0), (0, 0), (0, 0), (0, s_pad - s)))

    # ---- fold BN (eval mode) into the conv weights.
    inv1 = g1 / jnp.sqrt(v1 + BN_EPS)
    inv2 = g2 / jnp.sqrt(v2 + BN_EPS)
    wdw_flat = jnp.transpose(w_dw[:, 0].reshape(cin, 9), (1, 0))        # (9, Cin), tap = kh*3+kw
    wdw_s = (wdw_flat * inv1[None, :])[:, :, None].astype(jnp.float32)  # (9, Cin, 1)
    bias1 = ((b1 - m1 * inv1)[:, None]).astype(jnp.float32)             # (Cin, 1)
    wp_full = (w_pw[:, :, 0, 0] * inv2[:, None]).astype(jnp.float32)    # (Cout, Cin)
    bias2 = ((b2 - m2 * inv2)[:, None]).astype(jnp.float32)             # (Cout, 1)

    if cin <= 8:
        wp_arg = jnp.transpose(wp_full)[:, :, None]                     # (Cin, Cout, 1)
        wp_spec = pl.BlockSpec((cin, cout, 1), lambda i, t: (0, 0, 0))
    else:
        wp_arg = wp_full                                                # (Cout, Cin)
        wp_spec = pl.BlockSpec((cout, cin), lambda i, t: (0, 0))

    grid = (n, s_pad // ts)
    out = pl.pallas_call(
        _dsconv_kernel,
        out_shape=jax.ShapeDtypeStruct((n, cout, s_pad), jnp.float32),
        grid=grid,
        in_specs=[
            pl.BlockSpec((1, 9, cin, ts), lambda i, t: (i, 0, 0, t)),
            pl.BlockSpec((9, cin, 1), lambda i, t: (0, 0, 0)),
            pl.BlockSpec((cin, 1), lambda i, t: (0, 0)),
            wp_spec,
            pl.BlockSpec((cout, 1), lambda i, t: (0, 0)),
        ],
        out_specs=pl.BlockSpec((1, cout, ts), lambda i, t: (i, 0, t)),
        compiler_params=pltpu.CompilerParams(
            dimension_semantics=("parallel", "parallel"),
            vmem_limit_bytes=vmem_limit,
        ),
    )(ph, wdw_s, bias1, wp_arg, bias2)

    return out[:, :, :s].reshape(n, cout, hout, wout)   # NCHW


def ds_convolution_ref(x, params):
    """Pure-JAX reference (eval-mode BN), NCHW throughout."""
    (w_dw, w_pw, g1, b1, m1, v1, g2, b2, m2, v2) = params
    cin = x.shape[1]

    def bn(t, g, b, m, v):
        sh = (1, -1, 1, 1)
        return (t - m.reshape(sh)) / jnp.sqrt(v.reshape(sh) + BN_EPS) * g.reshape(sh) + b.reshape(sh)

    y = lax.conv_general_dilated(
        x, w_dw, window_strides=(2, 2), padding=((1, 1), (1, 1)),
        feature_group_count=cin, dimension_numbers=('NCHW', 'OIHW', 'NCHW'))
    y = jnp.clip(bn(y, g1, b1, m1, v1), 0.0, 6.0)
    z = lax.conv_general_dilated(
        y, w_pw, window_strides=(1, 1), padding=((0, 0), (0, 0)),
        dimension_numbers=('NCHW', 'OIHW', 'NCHW'))
    z = jnp.clip(bn(z, g2, b2, m2, v2), 0.0, 6.0)
    return z


if __name__ == "__main__":
    N, Cin, H, W = 2, 4, 16, 16
    Cout = 8

    key = jax.random.PRNGKey(0)
    keys = jax.random.split(key, 11)
    x = jax.random.normal(keys[0], (N, Cin, H, W), dtype=jnp.float32)

    # Deterministic parameter init (shapes follow nn.Conv2d / nn.BatchNorm2d in __init__).
    w_dw = jax.random.normal(keys[1], (Cin, 1, 3, 3), dtype=jnp.float32) * 0.3
    w_pw = jax.random.normal(keys[2], (Cout, Cin, 1, 1), dtype=jnp.float32) * 0.3
    g1 = 1.0 + 0.1 * jax.random.normal(keys[3], (Cin,), dtype=jnp.float32)
    b1 = 0.1 * jax.random.normal(keys[4], (Cin,), dtype=jnp.float32)
    m1 = 0.1 * jax.random.normal(keys[5], (Cin,), dtype=jnp.float32)
    v1 = 1.0 + 0.1 * jax.random.uniform(keys[6], (Cin,), dtype=jnp.float32)
    g2 = 1.0 + 0.1 * jax.random.normal(keys[7], (Cout,), dtype=jnp.float32)
    b2 = 0.1 * jax.random.normal(keys[8], (Cout,), dtype=jnp.float32)
    m2 = 0.1 * jax.random.normal(keys[9], (Cout,), dtype=jnp.float32)
    v2 = 1.0 + 0.1 * jax.random.uniform(keys[10], (Cout,), dtype=jnp.float32)

    params = (w_dw, w_pw, g1, b1, m1, v1, g2, b2, m2, v2)

    out = jax.block_until_ready(ds_convolution(x, params))
    ref = jax.block_until_ready(ds_convolution_ref(x, params))

    assert out.shape == (N, Cout, H // 2, W // 2), out.shape
    max_err = float(jnp.max(jnp.abs(out - ref)))
    assert jnp.allclose(out, ref, atol=1e-4, rtol=1e-4), max_err

    print("KERNEL_OK")
</pallas_src>

<mosaic_0001>
module attributes {stable_mosaic.version = 11 : i64} {
  func.func @_dsconv_kernel(%arg0: i32, %arg1: i32, %arg2: memref<1x9x4x64xf32, #tpu.memory_space<vmem>>, %arg3: memref<9x4x1xf32, #tpu.memory_space<vmem>>, %arg4: memref<4x1xf32, #tpu.memory_space<vmem>>, %arg5: memref<4x8x1xf32, #tpu.memory_space<vmem>>, %arg6: memref<8x1xf32, #tpu.memory_space<vmem>>, %arg7: memref<1x8x64xf32, #tpu.memory_space<vmem>>) attributes {dimension_semantics = [#tpu.dimension_semantics<parallel>, #tpu.dimension_semantics<parallel>], iteration_bounds = array<i64: 2, 1>, scalar_prefetch = 0 : i64, scratch_operands = 0 : i64, tpu.core_type = #tpu.core_type<tc>, window_params = [{transform_indices = @transform_0, window_bounds = array<i64: 1, 9, 4, 64>}, {pipeline_mode = #tpu.pipeline_mode<synchronous>, transform_indices = @transform_1, window_bounds = array<i64: 9, 4, 1>}, {pipeline_mode = #tpu.pipeline_mode<synchronous>, transform_indices = @transform_2, window_bounds = array<i64: 4, 1>}, {pipeline_mode = #tpu.pipeline_mode<synchronous>, transform_indices = @transform_3, window_bounds = array<i64: 4, 8, 1>}, {pipeline_mode = #tpu.pipeline_mode<synchronous>, transform_indices = @transform_4, window_bounds = array<i64: 8, 1>}, {transform_indices = @transform_5, window_bounds = array<i64: 1, 8, 64>}]} {
    %c0 = arith.constant 0 : index
    %c0_0 = arith.constant 0 : index
    %c0_1 = arith.constant 0 : index
    %0 = vector.load %arg3[%c0, %c0_0, %c0_1] : memref<9x4x1xf32, #tpu.memory_space<vmem>>, vector<9x4x1xf32>
    %c0_2 = arith.constant 0 : index
    %c0_3 = arith.constant 0 : index
    %c0_4 = arith.constant 0 : index
    %c0_5 = arith.constant 0 : index
    %1 = vector.load %arg2[%c0_2, %c0_3, %c0_4, %c0_5] : memref<1x9x4x64xf32, #tpu.memory_space<vmem>>, vector<1x1x4x64xf32>
    %2 = vector.shape_cast %1 : vector<1x1x4x64xf32> to vector<4x64xf32>
    %3 = vector.extract_strided_slice %0 {offsets = [0, 0, 0], sizes = [1, 4, 1], strides = [1, 1, 1]} : vector<9x4x1xf32> to vector<1x4x1xf32>
    %4 = vector.shape_cast %3 : vector<1x4x1xf32> to vector<4x1xf32>
    %5 = vector.broadcast %4 : vector<4x1xf32> to vector<4x64xf32>
    %6 = arith.mulf %2, %5 : vector<4x64xf32>
    %c0_6 = arith.constant 0 : index
    %c1 = arith.constant 1 : index
    %c0_7 = arith.constant 0 : index
    %c0_8 = arith.constant 0 : index
    %7 = vector.load %arg2[%c0_6, %c1, %c0_7, %c0_8] : memref<1x9x4x64xf32, #tpu.memory_space<vmem>>, vector<1x1x4x64xf32>
    %8 = vector.shape_cast %7 : vector<1x1x4x64xf32> to vector<4x64xf32>
    %9 = vector.extract_strided_slice %0 {offsets = [1, 0, 0], sizes = [1, 4, 1], strides = [1, 1, 1]} : vector<9x4x1xf32> to vector<1x4x1xf32>
    %10 = vector.shape_cast %9 : vector<1x4x1xf32> to vector<4x1xf32>
    %11 = vector.broadcast %10 : vector<4x1xf32> to vector<4x64xf32>
    %12 = arith.mulf %8, %11 : vector<4x64xf32>
    %13 = arith.addf %6, %12 : vector<4x64xf32>
    %c0_9 = arith.constant 0 : index
    %c2 = arith.constant 2 : index
    %c0_10 = arith.constant 0 : index
    %c0_11 = arith.constant 0 : index
    %14 = vector.load %arg2[%c0_9, %c2, %c0_10, %c0_11] : memref<1x9x4x64xf32, #tpu.memory_space<vmem>>, vector<1x1x4x64xf32>
    %15 = vector.shape_cast %14 : vector<1x1x4x64xf32> to vector<4x64xf32>
    %16 = vector.extract_strided_slice %0 {offsets = [2, 0, 0], sizes = [1, 4, 1], strides = [1, 1, 1]} : vector<9x4x1xf32> to vector<1x4x1xf32>
    %17 = vector.shape_cast %16 : vector<1x4x1xf32> to vector<4x1xf32>
    %18 = vector.broadcast %17 : vector<4x1xf32> to vector<4x64xf32>
    %19 = arith.mulf %15, %18 : vector<4x64xf32>
    %20 = arith.addf %13, %19 : vector<4x64xf32>
    %c0_12 = arith.constant 0 : index
    %c3 = arith.constant 3 : index
    %c0_13 = arith.constant 0 : index
    %c0_14 = arith.constant 0 : index
    %21 = vector.load %arg2[%c0_12, %c3, %c0_13, %c0_14] : memref<1x9x4x64xf32, #tpu.memory_space<vmem>>, vector<1x1x4x64xf32>
    %22 = vector.shape_cast %21 : vector<1x1x4x64xf32> to vector<4x64xf32>
    %23 = vector.extract_strided_slice %0 {offsets = [3, 0, 0], sizes = [1, 4, 1], strides = [1, 1, 1]} : vector<9x4x1xf32> to vector<1x4x1xf32>
    %24 = vector.shape_cast %23 : vector<1x4x1xf32> to vector<4x1xf32>
    %25 = vector.broadcast %24 : vector<4x1xf32> to vector<4x64xf32>
    %26 = arith.mulf %22, %25 : vector<4x64xf32>
    %27 = arith.addf %20, %26 : vector<4x64xf32>
    %c0_15 = arith.constant 0 : index
    %c4 = arith.constant 4 : index
    %c0_16 = arith.constant 0 : index
    %c0_17 = arith.constant 0 : index
    %28 = vector.load %arg2[%c0_15, %c4, %c0_16, %c0_17] : memref<1x9x4x64xf32, #tpu.memory_space<vmem>>, vector<1x1x4x64xf32>
    %29 = vector.shape_cast %28 : vector<1x1x4x64xf32> to vector<4x64xf32>
    %30 = vector.extract_strided_slice %0 {offsets = [4, 0, 0], sizes = [1, 4, 1], strides = [1, 1, 1]} : vector<9x4x1xf32> to vector<1x4x1xf32>
    %31 = vector.shape_cast %30 : vector<1x4x1xf32> to vector<4x1xf32>
    %32 = vector.broadcast %31 : vector<4x1xf32> to vector<4x64xf32>
    %33 = arith.mulf %29, %32 : vector<4x64xf32>
    %34 = arith.addf %27, %33 : vector<4x64xf32>
    %c0_18 = arith.constant 0 : index
    %c5 = arith.constant 5 : index
    %c0_19 = arith.constant 0 : index
    %c0_20 = arith.constant 0 : index
    %35 = vector.load %arg2[%c0_18, %c5, %c0_19, %c0_20] : memref<1x9x4x64xf32, #tpu.memory_space<vmem>>, vector<1x1x4x64xf32>
    %36 = vector.shape_cast %35 : vector<1x1x4x64xf32> to vector<4x64xf32>
    %37 = vector.extract_strided_slice %0 {offsets = [5, 0, 0], sizes = [1, 4, 1], strides = [1, 1, 1]} : vector<9x4x1xf32> to vector<1x4x1xf32>
    %38 = vector.shape_cast %37 : vector<1x4x1xf32> to vector<4x1xf32>
    %39 = vector.broadcast %38 : vector<4x1xf32> to vector<4x64xf32>
    %40 = arith.mulf %36, %39 : vector<4x64xf32>
    %41 = arith.addf %34, %40 : vector<4x64xf32>
    %c0_21 = arith.constant 0 : index
    %c6 = arith.constant 6 : index
    %c0_22 = arith.constant 0 : index
    %c0_23 = arith.constant 0 : index
    %42 = vector.load %arg2[%c0_21, %c6, %c0_22, %c0_23] : memref<1x9x4x64xf32, #tpu.memory_space<vmem>>, vector<1x1x4x64xf32>
    %43 = vector.shape_cast %42 : vector<1x1x4x64xf32> to vector<4x64xf32>
    %44 = vector.extract_strided_slice %0 {offsets = [6, 0, 0], sizes = [1, 4, 1], strides = [1, 1, 1]} : vector<9x4x1xf32> to vector<1x4x1xf32>
    %45 = vector.shape_cast %44 : vector<1x4x1xf32> to vector<4x1xf32>
    %46 = vector.broadcast %45 : vector<4x1xf32> to vector<4x64xf32>
    %47 = arith.mulf %43, %46 : vector<4x64xf32>
    %48 = arith.addf %41, %47 : vector<4x64xf32>
    %c0_24 = arith.constant 0 : index
    %c7 = arith.constant 7 : index
    %c0_25 = arith.constant 0 : index
    %c0_26 = arith.constant 0 : index
    %49 = vector.load %arg2[%c0_24, %c7, %c0_25, %c0_26] : memref<1x9x4x64xf32, #tpu.memory_space<vmem>>, vector<1x1x4x64xf32>
    %50 = vector.shape_cast %49 : vector<1x1x4x64xf32> to vector<4x64xf32>
    %51 = vector.extract_strided_slice %0 {offsets = [7, 0, 0], sizes = [1, 4, 1], strides = [1, 1, 1]} : vector<9x4x1xf32> to vector<1x4x1xf32>
    %52 = vector.shape_cast %51 : vector<1x4x1xf32> to vector<4x1xf32>
    %53 = vector.broadcast %52 : vector<4x1xf32> to vector<4x64xf32>
    %54 = arith.mulf %50, %53 : vector<4x64xf32>
    %55 = arith.addf %48, %54 : vector<4x64xf32>
    %c0_27 = arith.constant 0 : index
    %c8 = arith.constant 8 : index
    %c0_28 = arith.constant 0 : index
    %c0_29 = arith.constant 0 : index
    %56 = vector.load %arg2[%c0_27, %c8, %c0_28, %c0_29] : memref<1x9x4x64xf32, #tpu.memory_space<vmem>>, vector<1x1x4x64xf32>
    %57 = vector.shape_cast %56 : vector<1x1x4x64xf32> to vector<4x64xf32>
    %58 = vector.extract_strided_slice %0 {offsets = [8, 0, 0], sizes = [1, 4, 1], strides = [1, 1, 1]} : vector<9x4x1xf32> to vector<1x4x1xf32>
    %59 = vector.shape_cast %58 : vector<1x4x1xf32> to vector<4x1xf32>
    %60 = vector.broadcast %59 : vector<4x1xf32> to vector<4x64xf32>
    %61 = arith.mulf %57, %60 : vector<4x64xf32>
    %62 = arith.addf %55, %61 : vector<4x64xf32>
    %c0_30 = arith.constant 0 : index
    %c0_31 = arith.constant 0 : index
    %63 = vector.load %arg4[%c0_30, %c0_31] : memref<4x1xf32, #tpu.memory_space<vmem>>, vector<4x1xf32>
    %64 = vector.broadcast %63 : vector<4x1xf32> to vector<4x64xf32>
    %65 = arith.addf %62, %64 : vector<4x64xf32>
    %cst = arith.constant 0.000000e+00 : f32
    %cst_32 = arith.constant 6.000000e+00 : f32
    %66 = vector.broadcast %cst : f32 to vector<4x64xf32>
    %67 = arith.maximumf %66, %65 : vector<4x64xf32>
    %68 = vector.broadcast %cst_32 : f32 to vector<4x64xf32>
    %69 = arith.minimumf %68, %67 : vector<4x64xf32>
    %c0_33 = arith.constant 0 : index
    %c0_34 = arith.constant 0 : index
    %c0_35 = arith.constant 0 : index
    %70 = vector.load %arg5[%c0_33, %c0_34, %c0_35] : memref<4x8x1xf32, #tpu.memory_space<vmem>>, vector<4x8x1xf32>
    %71 = vector.extract_strided_slice %70 {offsets = [0, 0, 0], sizes = [1, 8, 1], strides = [1, 1, 1]} : vector<4x8x1xf32> to vector<1x8x1xf32>
    %72 = vector.shape_cast %71 : vector<1x8x1xf32> to vector<8x1xf32>
    %73 = vector.extract_strided_slice %69 {offsets = [0, 0], sizes = [1, 64], strides = [1, 1]} : vector<4x64xf32> to vector<1x64xf32>
    %74 = vector.broadcast %72 : vector<8x1xf32> to vector<8x64xf32>
    %75 = vector.broadcast %73 : vector<1x64xf32> to vector<8x64xf32>
    %76 = arith.mulf %74, %75 : vector<8x64xf32>
    %77 = vector.extract_strided_slice %70 {offsets = [1, 0, 0], sizes = [1, 8, 1], strides = [1, 1, 1]} : vector<4x8x1xf32> to vector<1x8x1xf32>
    %78 = vector.shape_cast %77 : vector<1x8x1xf32> to vector<8x1xf32>
    %79 = vector.extract_strided_slice %69 {offsets = [1, 0], sizes = [1, 64], strides = [1, 1]} : vector<4x64xf32> to vector<1x64xf32>
    %80 = vector.broadcast %78 : vector<8x1xf32> to vector<8x64xf32>
    %81 = vector.broadcast %79 : vector<1x64xf32> to vector<8x64xf32>
    %82 = arith.mulf %80, %81 : vector<8x64xf32>
    %83 = arith.addf %76, %82 : vector<8x64xf32>
    %84 = vector.extract_strided_slice %70 {offsets = [2, 0, 0], sizes = [1, 8, 1], strides = [1, 1, 1]} : vector<4x8x1xf32> to vector<1x8x1xf32>
    %85 = vector.shape_cast %84 : vector<1x8x1xf32> to vector<8x1xf32>
    %86 = vector.extract_strided_slice %69 {offsets = [2, 0], sizes = [1, 64], strides = [1, 1]} : vector<4x64xf32> to vector<1x64xf32>
    %87 = vector.broadcast %85 : vector<8x1xf32> to vector<8x64xf32>
    %88 = vector.broadcast %86 : vector<1x64xf32> to vector<8x64xf32>
    %89 = arith.mulf %87, %88 : vector<8x64xf32>
    %90 = arith.addf %83, %89 : vector<8x64xf32>
    %91 = vector.extract_strided_slice %70 {offsets = [3, 0, 0], sizes = [1, 8, 1], strides = [1, 1, 1]} : vector<4x8x1xf32> to vector<1x8x1xf32>
    %92 = vector.shape_cast %91 : vector<1x8x1xf32> to vector<8x1xf32>
    %93 = vector.extract_strided_slice %69 {offsets = [3, 0], sizes = [1, 64], strides = [1, 1]} : vector<4x64xf32> to vector<1x64xf32>
    %94 = vector.broadcast %92 : vector<8x1xf32> to vector<8x64xf32>
    %95 = vector.broadcast %93 : vector<1x64xf32> to vector<8x64xf32>
    %96 = arith.mulf %94, %95 : vector<8x64xf32>
    %97 = arith.addf %90, %96 : vector<8x64xf32>
    %c0_36 = arith.constant 0 : index
    %c0_37 = arith.constant 0 : index
    %98 = vector.load %arg6[%c0_36, %c0_37] : memref<8x1xf32, #tpu.memory_space<vmem>>, vector<8x1xf32>
    %99 = vector.broadcast %98 : vector<8x1xf32> to vector<8x64xf32>
    %100 = arith.addf %97, %99 : vector<8x64xf32>
    %cst_38 = arith.constant 0.000000e+00 : f32
    %cst_39 = arith.constant 6.000000e+00 : f32
    %101 = vector.broadcast %cst_38 : f32 to vector<8x64xf32>
    %102 = arith.maximumf %101, %100 : vector<8x64xf32>
    %103 = vector.broadcast %cst_39 : f32 to vector<8x64xf32>
    %104 = arith.minimumf %103, %102 : vector<8x64xf32>
    %c0_40 = arith.constant 0 : index
    %c0_41 = arith.constant 0 : index
    %c0_42 = arith.constant 0 : index
    %105 = vector.load %arg7[%c0_40, %c0_41, %c0_42] : memref<1x8x64xf32, #tpu.memory_space<vmem>>, vector<1x8x64xf32>
    %106 = vector.shape_cast %105 : vector<1x8x64xf32> to vector<8x64xf32>
    %107 = vector.shape_cast %104 : vector<8x64xf32> to vector<1x8x64xf32>
    tpu.vector_store %arg7[%c0_40, %c0_41, %c0_42], %107 {strides = array<i32>} : memref<1x8x64xf32, #tpu.memory_space<vmem>>, vector<1x8x64xf32>,
    return
  }
  func.func @transform_0(%arg0: i32, %arg1: i32) -> (i32, i32, i32, i32) {
    %c0_i32 = arith.constant 0 : i32
    %c0_i32_0 = arith.constant 0 : i32
    %c0_i32_1 = arith.constant 0 : i32
    return %arg0, %c0_i32, %c0_i32_0, %arg1 : i32, i32, i32, i32
  }
  func.func @transform_1(%arg0: i32, %arg1: i32) -> (i32, i32, i32) {
    %c0_i32 = arith.constant 0 : i32
    %c0_i32_0 = arith.constant 0 : i32
    %c0_i32_1 = arith.constant 0 : i32
    %c0_i32_2 = arith.constant 0 : i32
    return %c0_i32, %c0_i32_0, %c0_i32_1 : i32, i32, i32
  }
  func.func @transform_2(%arg0: i32, %arg1: i32) -> (i32, i32) {
    %c0_i32 = arith.constant 0 : i32
    %c0_i32_0 = arith.constant 0 : i32
    %c0_i32_1 = arith.constant 0 : i32
    return %c0_i32, %c0_i32_0 : i32, i32
  }
  func.func @transform_3(%arg0: i32, %arg1: i32) -> (i32, i32, i32) {
    %c0_i32 = arith.constant 0 : i32
    %c0_i32_0 = arith.constant 0 : i32
    %c0_i32_1 = arith.constant 0 : i32
    %c0_i32_2 = arith.constant 0 : i32
    return %c0_i32, %c0_i32_0, %c0_i32_1 : i32, i32, i32
  }
  func.func @transform_4(%arg0: i32, %arg1: i32) -> (i32, i32) {
    %c0_i32 = arith.constant 0 : i32
    %c0_i32_0 = arith.constant 0 : i32
    %c0_i32_1 = arith.constant 0 : i32
    return %c0_i32, %c0_i32_0 : i32, i32
  }
  func.func @transform_5(%arg0: i32, %arg1: i32) -> (i32, i32, i32) {
    %c0_i32 = arith.constant 0 : i32
    %c0_i32_0 = arith.constant 0 : i32
    return %arg0, %c0_i32, %arg1 : i32, i32, i32
  }
}

</mosaic_0001>

<llo_original>
// kernel: ds_convolution.1
$region0: #{ds_convolution.1}
  #allocation0 [shape = 'u32[]', space=smem, size = 0x4, offset = 0x4, fixed_abs, tag = 'smem constant byte address 0x4 - core index']
  #allocation1 [shape = 'u32[144,128]{1,0:T(1,128)}', space=vmem, size = 0x12000, scoped, tag = 'internal scratch']
  %s0 = inlined_call_operand.vmem [shape: f32[2,9,4,64], index: 0, kind: input, shape index: {}]
  %s1 = inlined_call_operand.vmem [shape: f32[9,4,1], index: 1, kind: input, shape index: {}]
  %s2 = inlined_call_operand.vmem [shape: f32[4,1], index: 2, kind: input, shape index: {}]
  %s3 = inlined_call_operand.vmem [shape: f32[4,8,1], index: 3, kind: input, shape index: {}]
  %s4 = inlined_call_operand.vmem [shape: f32[8,1], index: 4, kind: input, shape index: {}]
  %s5 = inlined_call_operand.vmem [shape: f32[2,8,64], index: 5, kind: output, shape index: {}]
  %s6 = sld [smem:[#allocation0]]
  $region53: #{ds_convolution.1} parent=0
    _
  %s8 = ssub.s32 1, %s6
  %s9 = scalar_select 0, %s8, %s6
  loop: start=0, step=1, limit=4
  $region2: #{ds_convolution.1} parent=0 // loop_pre_header
    _
  $region3: #{ds_convolution.1} parent=0 // loop_header
    %s11 = sphi 0, %s15
    %p12 = scmp.ge.s32.totalorder %s11, 4
    %s18 = sphi 0, %s30
    %s19 = sphi 0, %s26
    %s20 = sphi 0, %s18
    %s21 = sphi 0, %s19
    %s22 = sphi 0, %s20
    %s23 = sphi 0, %s21
    %s35 = sphi 0, %s37
    %s38 = sphi 0, %s35
    %s39 = sphi 0, %s38
    %s55 = sphi 0, %s39
    %s59 = sphi 0, %s59
    %s61 = sphi 0, %s59
    %s62 = sphi 0, %s61
    %s76 = sphi 0, %s62
    %s80 = sphi 0, %s80
    %s82 = sphi 0, %s80
    %s83 = sphi 0, %s82
    %s97 = sphi 0, %s83
    %s101 = sphi 0, %s101
    %s103 = sphi 0, %s101
    %s104 = sphi 0, %s103
    %s118 = sphi 0, %s104
    %s122 = sphi 0, %s122
    %s124 = sphi 0, %s122
    %s125 = sphi 0, %s124
    %s139 = sphi 0, %s125
    %s147 = sphi 0, %s149
    %s150 = sphi 0, %s147
    %s151 = sphi 0, %s150
    %s167 = sphi 0, %s151
  $region4: #{ds_convolution.1} parent=0 // loop_header_branch
    %14 = sbr.rel (%p12) target = $region8
  $region5: #{ds_convolution.1} parent=0 // loop_body
    %s16 = ssub.s32 %s11, 1
    %s17 = ssub.s32 %s11, 2
    %s24 = sadd.s32 1, %s19
    %p25 = scmp.ge.s32.totalorder %s24, 1
    %s26 = scalar_select %p25, 0, %s24
    %s27 = sadd.s32 1, %s18
    %s28 = scalar_select %p25, %s27, %s18
    %p29 = scmp.ge.s32.totalorder %s28, 2
    %s30 = scalar_select %p29, 0, %s28
    %s31 = ssub.s32 %s18, %s30
    %s32 = ssub.s32 %s19, %s26
    %s33 = sor.u32 %s31, %s32
    %p34 = scmp.eq.s32.totalorder %s33, 0
    %s36 = sadd.s32 %s35, 1
    %s37 = scalar_select %p34, %s35, %s36
    %p40 = pneg %p34
    %p41 = scmp.eq.s32.totalorder %s11, 1
    %p42 = por %p40, %p41
    %p43 = scmp.ne.s32.totalorder %s35, %s38
    %p44 = scmp.eq.s32.totalorder %s11, 0
    %p45 = por %p43, %p44
    %p46 = scmp.ne.s32.totalorder %s35, %s38
    %p47 = scmp.eq.s32.totalorder %s16, 1
    %p48 = por %p46, %p47
    %p49 = scmp.ne.s32.totalorder %s38, %s39
    %p50 = scmp.eq.s32.totalorder %s16, 0
    %p51 = por %p49, %p50
    %p52 = scmp.ne.s32.totalorder %s38, %s39
    %p53 = scmp.eq.s32.totalorder %s17, 1
    %p54 = por %p52, %p53
    %p56 = scmp.ne.s32.totalorder %s39, %s55
    %p57 = scmp.eq.s32.totalorder %s17, 0
    %p58 = por %p56, %p57
    %s60 = sadd.s32 %s59, 1
    %p63 = scmp.eq.s32.totalorder %s11, 1
    %p64 = scmp.ne.s32.totalorder %s59, %s61
    %p65 = scmp.eq.s32.totalorder %s11, 0
    %p66 = por %p64, %p65
    %p67 = scmp.ne.s32.totalorder %s59, %s61
    %p68 = scmp.eq.s32.totalorder %s16, 1
    %p69 = por %p67, %p68
    %p70 = scmp.ne.s32.totalorder %s61, %s62
    %p71 = scmp.eq.s32.totalorder %s16, 0
    %p72 = por %p70, %p71
    %p73 = scmp.ne.s32.totalorder %s61, %s62
    %p74 = scmp.eq.s32.totalorder %s17, 1
    %p75 = por %p73, %p74
    %p77 = scmp.ne.s32.totalorder %s62, %s76
    %p78 = scmp.eq.s32.totalorder %s17, 0
    %p79 = por %p77, %p78
    %s81 = sadd.s32 %s80, 1
    %p84 = scmp.eq.s32.totalorder %s11, 1
    %p85 = scmp.ne.s32.totalorder %s80, %s82
    %p86 = scmp.eq.s32.totalorder %s11, 0
    %p87 = por %p85, %p86
    %p88 = scmp.ne.s32.totalorder %s80, %s82
    %p89 = scmp.eq.s32.totalorder %s16, 1
    %p90 = por %p88, %p89
    %p91 = scmp.ne.s32.totalorder %s82, %s83
    %p92 = scmp.eq.s32.totalorder %s16, 0
    %p93 = por %p91, %p92
    %p94 = scmp.ne.s32.totalorder %s82, %s83
    %p95 = scmp.eq.s32.totalorder %s17, 1
    %p96 = por %p94, %p95
    %p98 = scmp.ne.s32.totalorder %s83, %s97
    %p99 = scmp.eq.s32.totalorder %s17, 0
    %p100 = por %p98, %p99
    %s102 = sadd.s32 %s101, 1
    %p105 = scmp.eq.s32.totalorder %s11, 1
    %p106 = scmp.ne.s32.totalorder %s101, %s103
    %p107 = scmp.eq.s32.totalorder %s11, 0
    %p108 = por %p106, %p107
    %p109 = scmp.ne.s32.totalorder %s101, %s103
    %p110 = scmp.eq.s32.totalorder %s16, 1
    %p111 = por %p109, %p110
    %p112 = scmp.ne.s32.totalorder %s103, %s104
    %p113 = scmp.eq.s32.totalorder %s16, 0
    %p114 = por %p112, %p113
    %p115 = scmp.ne.s32.totalorder %s103, %s104
    %p116 = scmp.eq.s32.totalorder %s17, 1
    %p117 = por %p115, %p116
    %p119 = scmp.ne.s32.totalorder %s104, %s118
    %p120 = scmp.eq.s32.totalorder %s17, 0
    %p121 = por %p119, %p120
    %s123 = sadd.s32 %s122, 1
    %p126 = scmp.eq.s32.totalorder %s11, 1
    %p127 = scmp.ne.s32.totalorder %s122, %s124
    %p128 = scmp.eq.s32.totalorder %s11, 0
    %p129 = por %p127, %p128
    %p130 = scmp.ne.s32.totalorder %s122, %s124
    %p131 = scmp.eq.s32.totalorder %s16, 1
    %p132 = por %p130, %p131
    %p133 = scmp.ne.s32.totalorder %s124, %s125
    %p134 = scmp.eq.s32.totalorder %s16, 0
    %p135 = por %p133, %p134
    %p136 = scmp.ne.s32.totalorder %s124, %s125
    %p137 = scmp.eq.s32.totalorder %s17, 1
    %p138 = por %p136, %p137
    %p140 = scmp.ne.s32.totalorder %s125, %s139
    %p141 = scmp.eq.s32.totalorder %s17, 0
    %p142 = por %p140, %p141
    %s143 = ssub.s32 %s18, %s30
    %s144 = ssub.s32 %s19, %s26
    %s145 = sor.u32 %s143, %s144
    %p146 = scmp.eq.s32.totalorder %s145, 0
    %s148 = sadd.s32 %s147, 1
    %s149 = scalar_select %p146, %s147, %s148
    %p152 = pneg %p146
    %p153 = scmp.eq.s32.totalorder %s11, 1
    %p154 = por %p152, %p153
    %p155 = scmp.ne.s32.totalorder %s147, %s150
    %p156 = scmp.eq.s32.totalorder %s11, 0
    %p157 = por %p155, %p156
    %p158 = scmp.ne.s32.totalorder %s147, %s150
    %p159 = scmp.eq.s32.totalorder %s16, 1
    %p160 = por %p158, %p159
    %p161 = scmp.ne.s32.totalorder %s150, %s151
    %p162 = scmp.eq.s32.totalorder %s16, 0
    %p163 = por %p161, %p162
    %p164 = scmp.ne.s32.totalorder %s150, %s151
    %p165 = scmp.eq.s32.totalorder %s17, 1
    %p166 = por %p164, %p165
    %p168 = scmp.ne.s32.totalorder %s151, %s167
    %p169 = scmp.eq.s32.totalorder %s17, 0
    %p170 = por %p168, %p169
    %p171 = scmp.le.s32.totalorder 1, %s11
    %p172 = scmp.lt.s32.totalorder %s11, 3
    %p173 = pnand %p171, %p172
    %p174 = pneg %p173
    // Predicated region
    $region9: #{ds_convolution.1} parent=5 // pred_check
      _
    $region10: #{ds_convolution.1} parent=5 // pred_check_branch
      %176 = sbr.rel (%p173) target = $region12
    $region11: #{ds_convolution.1} parent=5 // pred_region
      %s177 = ssub.s32 %s11, 1
      // Predicated region
      $region13: #{ds_convolution.1} parent=11 // pred_check
        %p178 = pneg %p72
      $region14: #{ds_convolution.1} parent=11 // pred_check_branch
        %180 = sbr.rel (%p178) target = $region16
      $region15: #{ds_convolution.1} parent=11 // pred_region
        _
      $region16: #{ds_convolution.1} parent=11 // pred_fallthru
        _
      // Predicated region
      $region17: #{ds_convolution.1} parent=11 // pred_check
        %p181 = pneg %p93
      $region18: #{ds_convolution.1} parent=11 // pred_check_branch
        %183 = sbr.rel (%p181) target = $region20
      $region19: #{ds_convolution.1} parent=11 // pred_region
        _
      $region20: #{ds_convolution.1} parent=11 // pred_fallthru
        _
      // Predicated region
      $region21: #{ds_convolution.1} parent=11 // pred_check
        %p184 = pneg %p114
      $region22: #{ds_convolution.1} parent=11 // pred_check_branch
        %186 = sbr.rel (%p184) target = $region24
      $region23: #{ds_convolution.1} parent=11 // pred_region
        _
      $region24: #{ds_convolution.1} parent=11 // pred_fallthru
        _
      // Predicated region
      $region25: #{ds_convolution.1} parent=11 // pred_check
        %p187 = pneg %p135
      $region26: #{ds_convolution.1} parent=11 // pred_check_branch
        %189 = sbr.rel (%p187) target = $region28
      $region27: #{ds_convolution.1} parent=11 // pred_region
        _
      $region28: #{ds_convolution.1} parent=11 // pred_fallthru
        _
    $region12: #{ds_convolution.1} parent=5 // pred_fallthru
      _
    %p190 = scmp.lt.s32.totalorder %s11, 2
    // Predicated region
    $region29: #{ds_convolution.1} parent=5 // pred_check
      %p191 = pneg %p190
    $region30: #{ds_convolution.1} parent=5 // pred_check_branch
      %193 = sbr.rel (%p191) target = $region32
    $region31: #{ds_convolution.1} parent=5 // pred_region
      // Predicated region
      $region33: #{ds_convolution.1} parent=31 // pred_check
        %p194 = pneg %p45
      $region34: #{ds_convolution.1} parent=31 // pred_check_branch
        %196 = sbr.rel (%p194) target = $region36
      $region35: #{ds_convolution.1} parent=31 // pred_region
        %p197 = scmp.lt.s32.totalorder %s18, 1
        %s198 = scalar_select %p197, %s18, 1
        %p199 = scmp.lt.s32.totalorder %s19, 0
        %s200 = scalar_select %p199, %s19, 0
        %s201 = smul.addr %s198, 9
        %s202 = sadd.s32 %s200, %s201
        %s203 = smul.addr %s202, 4
        %s204 = scalar_lea.vmem %s0, %s203
      $region36: #{ds_convolution.1} parent=31 // pred_fallthru
        _
    $region32: #{ds_convolution.1} parent=5 // pred_fallthru
      _
    %p205 = scmp.le.s32.totalorder 1, %s11
    %p206 = scmp.lt.s32.totalorder %s11, 3
    %p207 = pnand %p205, %p206
    %p208 = pneg %p207
    // Predicated region
    $region37: #{ds_convolution.1} parent=5 // pred_check
      _
    $region38: #{ds_convolution.1} parent=5 // pred_check_branch
      %210 = sbr.rel (%p207) target = $region40
    $region39: #{ds_convolution.1} parent=5 // pred_region
      %s211 = ssub.s32 %s11, 1
      %p212 = scmp.lt.s32.totalorder %s20, 1
      %s213 = scalar_select %p212, %s20, 1
      %p214 = scmp.lt.s32.totalorder %s21, 0
      %s215 = scalar_select %p214, %s21, 0
      %s216 = smul.addr %s213, 9
      %s217 = sadd.s32 %s215, %s216
      %s218 = smul.addr %s217, 4
      %s219 = scalar_lea.vmem %s0, %s218
      %p220 = pneg %p51
      %p221 = pneg %p48
      %p222 = pneg %p72
      %p223 = pneg %p69
      %p224 = pneg %p93
      %p225 = pneg %p90
      %p226 = pneg %p114
      %p227 = pneg %p111
      %p228 = pneg %p135
      %p229 = pneg %p132
      %p230 = pneg %p163
      %p231 = pneg %p160
      %p232 = scmp.lt.s32.totalorder %s20, 1
      %s233 = scalar_select %p232, %s20, 1
      %p234 = scmp.lt.s32.totalorder %s21, 0
      %s235 = scalar_select %p234, %s21, 0
      %s236 = sadd.s32 %s235, %s233
      %s237 = smul.addr %s236, 8
      %s238 = scalar_lea.vmem %s5, %s237
      %p239 = scmp.lt.s32.totalorder %s20, 1
      %s240 = scalar_select %p239, %s20, 1
      %p241 = scmp.lt.s32.totalorder %s21, 0
      %s242 = scalar_select %p241, %s21, 0
      %s243 = smul.addr %s240, 9
      %s244 = sadd.s32 %s242, %s243
      %s245 = smul.addr %s244, 4
      %s246 = scalar_lea.vmem %s0, %s245
      %p247 = scmp.lt.s32.totalorder %s20, 1
      %s248 = scalar_select %p247, %s20, 1
      %p249 = scmp.lt.s32.totalorder %s21, 0
      %s250 = scalar_select %p249, %s21, 0
      %s251 = sadd.s32 %s250, %s248
      %s252 = smul.addr %s251, 8
      %s253 = scalar_lea.vmem %s5, %s252
      %v254 = vld [vmem:[%s1] sm:$0xf]
      %v255 = vld [vmem:[%s1 + $0x4] sm:$0xf]
      %v256 = vld [vmem:[%s1 + $0x8] sm:$0xf]
      %v257 = vld [vmem:[%s1 + $0xc] sm:$0xf]
      %v258 = vld [vmem:[%s1 + $0x10] sm:$0xf]
      %v259 = vld [vmem:[%s1 + $0x14] sm:$0xf]
      %v260 = vld [vmem:[%s1 + $0x18] sm:$0xf]
      %v261 = vld [vmem:[%s1 + $0x1c] sm:$0xf]
      %v262 = vld [vmem:[%s1 + $0x20] sm:$0xf]
      %v263 = vld [vmem:[%s246] sm:$0xf]
      %265 = vset.pattern.permute.xlu0 0
      %266 = vperm.xlu0 %265, %v254
      %v267 = vpop.permute.xlu0 %266
      %v269 = vmul.f32 %v263, %v267
      %s270 = scalar_lea.vmem %s246, 4
      %v271 = vld [vmem:[%s270] sm:$0xf]
      %273 = vset.pattern.permute.xlu0 0
      %274 = vperm.xlu0 %273, %v255
      %v275 = vpop.permute.xlu0 %274
      %v277 = vmul.f32 %v271, %v275
      %v278 = vadd.f32 %v269, %v277
      %s279 = scalar_lea.vmem %s246, 8
      %v280 = vld [vmem:[%s279] sm:$0xf]
      %282 = vset.pattern.permute.xlu0 0
      %283 = vperm.xlu0 %282, %v256
      %v284 = vpop.permute.xlu0 %283
      %v286 = vmul.f32 %v280, %v284
      %v287 = vadd.f32 %v278, %v286
      %s288 = scalar_lea.vmem %s246, 12
      %v289 = vld [vmem:[%s288] sm:$0xf]
      %291 = vset.pattern.permute.xlu0 0
      %292 = vperm.xlu0 %291, %v257
      %v293 = vpop.permute.xlu0 %292
      %v295 = vmul.f32 %v289, %v293
      %v296 = vadd.f32 %v287, %v295
      %s297 = scalar_lea.vmem %s246, 16
      %v298 = vld [vmem:[%s297] sm:$0xf]
      %300 = vset.pattern.permute.xlu0 0
      %301 = vperm.xlu0 %300, %v258
      %v302 = vpop.permute.xlu0 %301
      %v304 = vmul.f32 %v298, %v302
      %v305 = vadd.f32 %v296, %v304
      %s306 = scalar_lea.vmem %s246, 20
      %v307 = vld [vmem:[%s306] sm:$0xf]
      %309 = vset.pattern.permute.xlu0 0
      %310 = vperm.xlu0 %309, %v259
      %v311 = vpop.permute.xlu0 %310
      %v313 = vmul.f32 %v307, %v311
      %v314 = vadd.f32 %v305, %v313
      %s315 = scalar_lea.vmem %s246, 24
      %v316 = vld [vmem:[%s315] sm:$0xf]
      %318 = vset.pattern.permute.xlu0 0
      %319 = vperm.xlu0 %318, %v260
      %v320 = vpop.permute.xlu0 %319
      %v322 = vmul.f32 %v316, %v320
      %v323 = vadd.f32 %v314, %v322
      %s324 = scalar_lea.vmem %s246, 28
      %v325 = vld [vmem:[%s324] sm:$0xf]
      %327 = vset.pattern.permute.xlu0 0
      %328 = vperm.xlu0 %327, %v261
      %v329 = vpop.permute.xlu0 %328
      %v331 = vmul.f32 %v325, %v329
      %v332 = vadd.f32 %v323, %v331
      %s333 = scalar_lea.vmem %s246, 32
      %v334 = vld [vmem:[%s333] sm:$0xf]
      %336 = vset.pattern.permute.xlu0 0
      %337 = vperm.xlu0 %336, %v262
      %v338 = vpop.permute.xlu0 %337
      %v340 = vmul.f32 %v334, %v338
      %v341 = vadd.f32 %v332, %v340
      %v342 = vld [vmem:[%s2] sm:$0xf]
      %344 = vset.pattern.permute.xlu0 0
      %345 = vperm.xlu0 %344, %v342
      %v346 = vpop.permute.xlu0 %345
      %v348 = vadd.f32 %v341, %v346
      %v349 = vmax.f32 %v348, 0.0
      %v350 = vmin.f32 %v349, 6.0
      %v351 = vld [vmem:[%s3] sm:$0xff]
      %v352 = vld [vmem:[%s3 + $0x8] sm:$0xff]
      %v353 = vld [vmem:[%s3 + $0x10] sm:$0xff]
      %v354 = vld [vmem:[%s3 + $0x18] sm:$0xff]
      %356 = vset.pattern.permute.xlu0 0
      %357 = vperm.xlu0 %356, %v351
      %v358 = vpop.permute.xlu0 %357
      %v360 = vlaneseq
      %v361 = vshrl.u32 %v360, 7
      %v362 = vsub.s32 0, %v361
      %v363 = vrot.slane %v350, %v362
      %v364 = vmul.f32 %v358, %v363
      %366 = vset.pattern.permute.xlu0 0
      %367 = vperm.xlu0 %366, %v352
      %v368 = vpop.permute.xlu0 %367
      %v370 = vlaneseq
      %v371 = vshrl.u32 %v370, 7
      %v372 = vsub.s32 1, %v371
      %v373 = vrot.slane %v350, %v372
      %v374 = vmul.f32 %v368, %v373
      %v375 = vadd.f32 %v364, %v374
      %377 = vset.pattern.permute.xlu0 0
      %378 = vperm.xlu0 %377, %v353
      %v379 = vpop.permute.xlu0 %378
      %v381 = vlaneseq
      %v382 = vshrl.u32 %v381, 7
      %v383 = vsub.s32 2, %v382
      %v384 = vrot.slane %v350, %v383
      %v385 = vmul.f32 %v379, %v384
      %v386 = vadd.f32 %v375, %v385
      %388 = vset.pattern.permute.xlu0 0
      %389 = vperm.xlu0 %388, %v354
      %v390 = vpop.permute.xlu0 %389
      %v392 = vlaneseq
      %v393 = vshrl.u32 %v392, 7
      %v394 = vsub.s32 3, %v393
      %v395 = vrot.slane %v350, %v394
      %v396 = vmul.f32 %v390, %v395
      %v397 = vadd.f32 %v386, %v396
      %v398 = vld [vmem:[%s4] sm:$0xff]
      %400 = vset.pattern.permute.xlu0 0
      %401 = vperm.xlu0 %400, %v398
      %v402 = vpop.permute.xlu0 %401
      %v404 = vadd.f32 %v397, %v402
      %v405 = vmax.f32 %v404, 0.0
      %v406 = vmin.f32 %v405, 6.0
      %vm407 = vcmask 523264
      %408 = vst.msk [vmem:[%s253] sm:$0xff] %vm407, %v406
      %p409 = scmp.lt.s32.totalorder %s20, 1
      %s410 = scalar_select %p409, %s20, 1
      %p411 = scmp.lt.s32.totalorder %s21, 0
      %s412 = scalar_select %p411, %s21, 0
      %s413 = sadd.s32 %s412, %s410
      %s414 = smul.addr %s413, 8
      %s415 = scalar_lea.vmem %s5, %s414
      // Predicated region
      $region41: #{ds_convolution.1} parent=39 // pred_check
        %p416 = pneg %p160
      $region42: #{ds_convolution.1} parent=39 // pred_check_branch
        %418 = sbr.rel (%p416) target = $region44
      $region43: #{ds_convolution.1} parent=39 // pred_region
        _
      $region44: #{ds_convolution.1} parent=39 // pred_fallthru
        _
    $region40: #{ds_convolution.1} parent=5 // pred_fallthru
      _
    %p419 = scmp.le.s32.totalorder 2, %s11
    // Predicated region
    $region45: #{ds_convolution.1} parent=5 // pred_check
      %p420 = pneg %p419
    $region46: #{ds_convolution.1} parent=5 // pred_check_branch
      %422 = sbr.rel (%p420) target = $region48
    $region47: #{ds_convolution.1} parent=5 // pred_region
      %s423 = ssub.s32 %s11, 2
      // Predicated region
      $region49: #{ds_convolution.1} parent=47 // pred_check
        %p424 = pneg %p166
      $region50: #{ds_convolution.1} parent=47 // pred_check_branch
        %426 = sbr.rel (%p424) target = $region52
      $region51: #{ds_convolution.1} parent=47 // pred_region
        %p427 = scmp.lt.s32.totalorder %s22, 1
        %s428 = scalar_select %p427, %s22, 1
        %p429 = scmp.lt.s32.totalorder %s23, 0
        %s430 = scalar_select %p429, %s23, 0
        %s431 = sadd.s32 %s430, %s428
        %s432 = smul.addr %s431, 8
        %s433 = scalar_lea.vmem %s5, %s432
      $region52: #{ds_convolution.1} parent=47 // pred_fallthru
        _
    $region48: #{ds_convolution.1} parent=5 // pred_fallthru
      _
  $region6: #{ds_convolution.1} parent=0 // loop_footer
    %s15 = sadd.s32 1, %s11
  $region7: #{ds_convolution.1} parent=0 // loop_footer_branch
    %10 = sbr.rel target = $region3
  $region8: #{ds_convolution.1} parent=0 // loop_exit
    _

</llo_original>
